<compile_context>
chip_gen: v5e
topology: v5e:2x2
jax: 0.10.0
libtpu: 0.0.40
codegen_flags: <defaults>
</compile_context>

<pallas_src>
import functools

import jax
import jax.numpy as jnp
from jax.experimental import pallas as pl
from jax.experimental.pallas import tpu as pltpu


def _weighted_l1_tile_sum_kernel(t_ref, p_ref, w_ref, out_ref, *,
                                 t_h, h_total, mask_rows):
    """Grid: (channel, h_tile).

    t_ref, p_ref : (B, tH, W) VMEM block of one channel's latitude tile
    w_ref        : (tH, 1) latitude weights for this tile
    out_ref      : (1, 1) partial-sum slot for this (channel, tile)
    """
    t = t_ref[...].astype(jnp.float32)
    p = p_ref[...].astype(jnp.float32)
    w = w_ref[...].astype(jnp.float32)
    # base loss: L1 with reduction='none' (the module's validation default)
    weighted = jnp.abs(t - p) * w                      # (B, tH, W) f32
    if mask_rows:
        # Ragged latitude tail: zero rows past H.  jnp.where (select) is used
        # so any garbage/NaN in the DMA'd overhang cannot leak into the sum.
        h = pl.program_id(1)
        row = jax.lax.broadcasted_iota(jnp.int32, weighted.shape, 1)
        weighted = jnp.where(row + h * t_h < h_total, weighted, 0.0)
    # Per-(channel, tile) partial sum -> independent output block, so both grid
    # axes stay "parallel" (no resident accumulator / ordering dependency).
    out_ref[...] = jnp.zeros_like(out_ref) + jnp.sum(weighted)


def _pick_lat_tile(H, B, W, itemsize, block_budget_bytes):
    """Largest latitude tile whose VMEM block stays within the budget.

    Block footprint is estimated with W padded to the 128-lane tile so small /
    non-multiple-of-128 W is accounted for.  Returns (tH, n_tiles, mask_rows);
    tH is either the full H or a multiple of 8 (>= 8) so the BlockSpec is
    always layout-legal, and H that tH does not divide gets a masked tail.
    """
    w_pad = ((W + 127) // 128) * 128
    bytes_per_row = max(1, B * w_pad * itemsize)
    if H * bytes_per_row <= block_budget_bytes:
        tH = H                                   # whole H fits in one block
    else:
        limit_rows = block_budget_bytes // bytes_per_row
        tH = max(8, (min(limit_rows, H) // 8) * 8)   # floor at the 8-row tile
    n_tiles = pl.cdiv(H, tH)
    mask_rows = (H % tH) != 0
    return tH, n_tiles, mask_rows


def variable_total_loss_2d(target, pred, lat_weights, var_weights,
                           *, block_budget_bytes=4 * 1024 * 1024,
                           vmem_limit_bytes=32 * 1024 * 1024):
    """target/pred: (B, C, H, W). lat_weights: (H,). var_weights: (C,). -> scalar.

    Note: block_budget_bytes / vmem_limit_bytes defaults are safe on every TPU
    generation (v5e/v6e/v7x).  On v5e/v6e (128 MiB physical VMEM) they can be
    raised to ~8 MiB / 64 MiB for a small (~1-3%) win; keep the defaults on
    v7x (64 MiB physical VMEM).
    """
    B, C, H, W = target.shape
    assert pred.shape == target.shape
    itemsize = jnp.dtype(target.dtype).itemsize
    latw = lat_weights.astype(jnp.float32).reshape(H, 1)

    tH, n_h, mask_rows = _pick_lat_tile(H, B, W, itemsize, block_budget_bytes)

    kernel = functools.partial(_weighted_l1_tile_sum_kernel,
                               t_h=tH, h_total=H, mask_rows=mask_rows)

    cost = pl.CostEstimate(
        flops=4 * B * C * H * W,                # sub, abs, mul, add per element
        transcendentals=0,
        bytes_accessed=2 * B * C * H * W * itemsize + H * 4 + C * n_h * 4,
    )

    tile_sums = pl.pallas_call(
        kernel,
        out_shape=jax.ShapeDtypeStruct((C, n_h, 1, 1), jnp.float32),
        grid_spec=pltpu.PrefetchScalarGridSpec(
            num_scalar_prefetch=0,
            grid=(C, n_h),
            in_specs=[
                pl.BlockSpec((B, None, tH, W), lambda c, h: (0, c, h, 0)),
                pl.BlockSpec((B, None, tH, W), lambda c, h: (0, c, h, 0)),
                pl.BlockSpec((tH, 1), lambda c, h: (h, 0)),
            ],
            # One (1, 1) slot per (channel, latitude tile): no cross-step
            # dependency, so both grid axes can be sharded across TensorCores.
            out_specs=pl.BlockSpec((None, None, 1, 1), lambda c, h: (c, h, 0, 0)),
        ),
        compiler_params=pltpu.CompilerParams(
            dimension_semantics=("parallel", "parallel"),
            # 2 inputs x 2 pipeline buffers x <=4 MiB blocks + weights/outputs
            # fits comfortably here on every generation (incl. v5e's 16 MiB
            # scoped default, which needs this explicit raise).
            vmem_limit_bytes=vmem_limit_bytes,
        ),
        cost_estimate=cost,
    )(target, pred, latw)

    # Epilogue: sum partial sums over latitude tiles, fold in the variable
    # weights, the per-channel mean (/(B*H*W)) and the channel mean (/C).
    ch_sums = jnp.sum(tile_sums[:, :, 0, 0], axis=1)            # (C,)
    varw = var_weights.astype(jnp.float32)
    return jnp.sum(ch_sums * varw) / jnp.float32(B * H * W * C)


def _reference_loss(target, pred, lat_weights, var_weights):
    t = target.astype(jnp.float32)
    p = pred.astype(jnp.float32)
    diff = jnp.abs(t - p)
    per_ch = jnp.mean(diff * lat_weights[None, None, :, None], axis=(0, 2, 3))
    return jnp.mean(per_ch * var_weights)


def _make_lat_weights(H):
    # Deterministic latitude weights: cos(lat)/mean(cos(lat)), as in
    # latitude_weights(). (The module takes column 10 of the (lat, lon)
    # expansion; all columns are identical.)
    lat_deg = jnp.linspace(-80.0, 80.0, H)
    w = jnp.cos(jnp.deg2rad(lat_deg))
    return (w / jnp.mean(w)).astype(jnp.float32)


if __name__ == "__main__":
    key = jax.random.PRNGKey(0)

    # --- check 1: module-like toy shape (small W), small budget so H is split
    #     into multiple tiles (tH=8, 2 tiles, no mask) --------------------------
    B, C, H, W = 2, 4, 16, 16
    k1, k2, key = (*jax.random.split(key, 2), key)
    target = jax.random.normal(k1, (B, C, H, W), dtype=jnp.float32)
    pred = jax.random.normal(k2, (B, C, H, W), dtype=jnp.float32)
    lat_w = _make_lat_weights(H)
    var_w = jnp.array([1.0, 0.5, 2.0, 1.5], dtype=jnp.float32)

    loss = variable_total_loss_2d(target, pred, lat_w, var_w,
                                  block_budget_bytes=8192)
    loss = jax.block_until_ready(loss)
    ref = _reference_loss(target, pred, lat_w, var_w)
    assert jnp.allclose(loss, ref, rtol=1e-5, atol=1e-6), (loss, ref)

    # --- check 2: H not divisible by the 8-row tile (ERA5-721-like ragged tail,
    #     exercises the masked-row path) ---------------------------------------
    B2, C2, H2, W2 = 2, 3, 12, 128
    k3, k4, key = (*jax.random.split(key, 2), key)
    target2 = jax.random.normal(k3, (B2, C2, H2, W2), dtype=jnp.float32)
    pred2 = jax.random.normal(k4, (B2, C2, H2, W2), dtype=jnp.float32)
    lat_w2 = _make_lat_weights(H2)
    var_w2 = jnp.array([1.0, 0.5, 2.0], dtype=jnp.float32)

    loss2 = variable_total_loss_2d(target2, pred2, lat_w2, var_w2,
                                   block_budget_bytes=8192)
    loss2 = jax.block_until_ready(loss2)
    ref2 = _reference_loss(target2, pred2, lat_w2, var_w2)
    assert jnp.allclose(loss2, ref2, rtol=1e-5, atol=1e-6), (loss2, ref2)

    # --- check 3: bf16 inputs (half the HBM traffic), full-H single tile ------
    B3, C3, H3, W3 = 2, 4, 16, 128
    k5, k6 = jax.random.split(key)
    target3 = jax.random.normal(k5, (B3, C3, H3, W3), dtype=jnp.float32)
    pred3 = jax.random.normal(k6, (B3, C3, H3, W3), dtype=jnp.float32)
    t3_bf16 = target3.astype(jnp.bfloat16)
    p3_bf16 = pred3.astype(jnp.bfloat16)
    lat_w3 = _make_lat_weights(H3)
    var_w3 = jnp.array([1.0, 0.5, 2.0, 1.5], dtype=jnp.float32)

    loss3 = variable_total_loss_2d(t3_bf16, p3_bf16, lat_w3, var_w3)
    loss3 = jax.block_until_ready(loss3)
    ref3 = _reference_loss(t3_bf16, p3_bf16, lat_w3, var_w3)
    assert jnp.allclose(loss3, ref3, rtol=1e-5, atol=1e-6), (loss3, ref3)

    print("KERNEL_OK")
</pallas_src>

<mosaic_0001>
module attributes {stable_mosaic.version = 11 : i64} {
  func.func @_weighted_l1_tile_sum_kernel(%arg0: i32, %arg1: i32, %arg2: memref<2x1x8x16xf32, #tpu.memory_space<vmem>>, %arg3: memref<2x1x8x16xf32, #tpu.memory_space<vmem>>, %arg4: memref<8x1xf32, #tpu.memory_space<vmem>>, %arg5: memref<1x1x1x1xf32, #tpu.memory_space<vmem>>) attributes {dimension_semantics = [#tpu.dimension_semantics<parallel>, #tpu.dimension_semantics<parallel>], iteration_bounds = array<i64: 4, 2>, scalar_prefetch = 0 : i64, scratch_operands = 0 : i64, tpu.core_type = #tpu.core_type<tc>, window_params = [{transform_indices = @transform_0, window_bounds = array<i64: 2, 1, 8, 16>}, {transform_indices = @transform_1, window_bounds = array<i64: 2, 1, 8, 16>}, {transform_indices = @transform_2, window_bounds = array<i64: 8, 1>}, {transform_indices = @transform_3, window_bounds = array<i64: 1, 1, 1, 1>}]} {
    %c0 = arith.constant 0 : index
    %c0_0 = arith.constant 0 : index
    %c0_1 = arith.constant 0 : index
    %c0_2 = arith.constant 0 : index
    %0 = vector.load %arg2[%c0, %c0_0, %c0_1, %c0_2] : memref<2x1x8x16xf32, #tpu.memory_space<vmem>>, vector<2x1x8x16xf32>
    %1 = vector.shape_cast %0 : vector<2x1x8x16xf32> to vector<2x8x16xf32>
    %c0_3 = arith.constant 0 : index
    %c0_4 = arith.constant 0 : index
    %c0_5 = arith.constant 0 : index
    %c0_6 = arith.constant 0 : index
    %2 = vector.load %arg3[%c0_3, %c0_4, %c0_5, %c0_6] : memref<2x1x8x16xf32, #tpu.memory_space<vmem>>, vector<2x1x8x16xf32>
    %3 = vector.shape_cast %2 : vector<2x1x8x16xf32> to vector<2x8x16xf32>
    %c0_7 = arith.constant 0 : index
    %c0_8 = arith.constant 0 : index
    %4 = vector.load %arg4[%c0_7, %c0_8] : memref<8x1xf32, #tpu.memory_space<vmem>>, vector<8x1xf32>
    %5 = arith.subf %1, %3 : vector<2x8x16xf32>
    %6 = math.absf %5 : vector<2x8x16xf32>
    %7 = vector.shape_cast %4 : vector<8x1xf32> to vector<1x8x1xf32>
    %8 = vector.broadcast %7 : vector<1x8x1xf32> to vector<2x8x16xf32>
    %9 = arith.mulf %6, %8 : vector<2x8x16xf32>
    %cst = arith.constant 0.000000e+00 : f32
    %10 = vector.broadcast %cst : f32 to vector<1x1xf32>
    %11 = vector.shape_cast %9 : vector<2x8x16xf32> to vector<1x2x8x16xf32>
    %cst_9 = arith.constant dense<0.000000e+00> : vector<1xf32>
    %12 = vector.multi_reduction <add>, %11, %cst_9 [1, 2, 3] : vector<1x2x8x16xf32> to vector<1xf32>
    %13 = vector.shape_cast %12 : vector<1xf32> to vector<1x1x1x1xf32>
    %14 = vector.extract %13[0, 0, 0, 0] : f32 from vector<1x1x1x1xf32>
    %15 = vector.broadcast %14 : f32 to vector<1x1xf32>
    %16 = arith.addf %10, %15 : vector<1x1xf32>
    %c0_10 = arith.constant 0 : index
    %c0_11 = arith.constant 0 : index
    %c0_12 = arith.constant 0 : index
    %c0_13 = arith.constant 0 : index
    %17 = vector.load %arg5[%c0_10, %c0_11, %c0_12, %c0_13] : memref<1x1x1x1xf32, #tpu.memory_space<vmem>>, vector<1x1x1x1xf32>
    %18 = vector.shape_cast %17 : vector<1x1x1x1xf32> to vector<1x1xf32>
    %19 = vector.shape_cast %16 : vector<1x1xf32> to vector<1x1x1x1xf32>
    tpu.vector_store %arg5[%c0_10, %c0_11, %c0_12, %c0_13], %19 {strides = array<i32>} : memref<1x1x1x1xf32, #tpu.memory_space<vmem>>, vector<1x1x1x1xf32>,
    return
  }
  func.func @transform_0(%arg0: i32, %arg1: i32) -> (i32, i32, i32, i32) {
    %c0_i32 = arith.constant 0 : i32
    %c0_i32_0 = arith.constant 0 : i32
    %c0_i32_1 = arith.constant 0 : i32
    return %c0_i32, %arg0, %arg1, %c0_i32_0 : i32, i32, i32, i32
  }
  func.func @transform_1(%arg0: i32, %arg1: i32) -> (i32, i32, i32, i32) {
    %c0_i32 = arith.constant 0 : i32
    %c0_i32_0 = arith.constant 0 : i32
    %c0_i32_1 = arith.constant 0 : i32
    return %c0_i32, %arg0, %arg1, %c0_i32_0 : i32, i32, i32, i32
  }
  func.func @transform_2(%arg0: i32, %arg1: i32) -> (i32, i32) {
    %c0_i32 = arith.constant 0 : i32
    %c0_i32_0 = arith.constant 0 : i32
    return %arg1, %c0_i32 : i32, i32
  }
  func.func @transform_3(%arg0: i32, %arg1: i32) -> (i32, i32, i32, i32) {
    %c0_i32 = arith.constant 0 : i32
    %c0_i32_0 = arith.constant 0 : i32
    %c0_i32_1 = arith.constant 0 : i32
    return %arg0, %arg1, %c0_i32, %c0_i32_0 : i32, i32, i32, i32
  }
}

</mosaic_0001>

<llo_original>
// kernel: tpu_custom_call.1
$region0: #{tpu_custom_call.1}
  #allocation0 [shape = 'u32[]', space=smem, size = 0x4, offset = 0x4, fixed_abs, tag = 'smem constant byte address 0x4 - core index']
  #allocation1 [shape = 'u32[72,128]{1,0:T(1,128)}', space=vmem, size = 0x9000, scoped, tag = 'internal scratch']
  %s0 = inlined_call_operand.hbm [shape: f32[2,4,16,16], index: 0, kind: input, shape index: {}]
  %s1 = inlined_call_operand.hbm [shape: f32[2,4,16,16], index: 1, kind: input, shape index: {}]
  %s2 = inlined_call_operand.vmem [shape: f32[16,1], index: 2, kind: input, shape index: {}]
  %s3 = inlined_call_operand.vmem [shape: f32[4,2,1,1], index: 3, kind: output, shape index: {}]
  %s4 = sld [smem:[#allocation0]]
  $region53: #{tpu_custom_call.1} parent=0
    _
  %s6 = ssub.s32 1, %s4
  %s7 = scalar_select 0, %s6, %s4
  $region1: #{tpu_custom_call.1} parent=0
    #allocation2 [shape = 'u8[16384]{0}', space=vmem, size = 0x4000, scoped, tag = 'input window, operand 0']
    #allocation3 [shape = 's32[2]{0}', space=sflag, size = 0x8, scoped, tag = 'scoped memory for tpu_custom_call.1']
    #allocation4 [shape = 'u8[16384]{0}', space=vmem, size = 0x4000, scoped, tag = 'input window, operand 1']
    #allocation5 [shape = 's32[2]{0}', space=sflag, size = 0x8, scoped, tag = 'scoped memory for tpu_custom_call.1']
    %8 = vsyncpa [#allocation3], 0
    %s9 = scalar_lea.sflag [#allocation3], 1
    %10 = vsyncpa %s9, 0
    %11 = vsyncpa [#allocation5], 0
    %s12 = scalar_lea.sflag [#allocation5], 1
    %13 = vsyncpa %s12, 0
    loop: start=0, step=1, limit=10
    $region2: #{tpu_custom_call.1} parent=1 // loop_pre_header
      _
    $region3: #{tpu_custom_call.1} parent=1 // loop_header
      %s15 = sphi 0, %s19
      %p16 = scmp.ge.s32.totalorder %s15, 10
      %s22 = sphi 0, %s34
      %s23 = sphi 0, %s30
      %s24 = sphi 0, %s22
      %s25 = sphi 0, %s23
      %s26 = sphi 0, %s24
      %s27 = sphi 0, %s25
      %s39 = sphi 0, %s41
      %s42 = sphi 0, %s39
      %s43 = sphi 0, %s42
      %s59 = sphi 0, %s43
      %s67 = sphi 0, %s69
      %s70 = sphi 0, %s67
      %s71 = sphi 0, %s70
      %s87 = sphi 0, %s71
      %s93 = sphi 0, %s95
      %s96 = sphi 0, %s93
      %s97 = sphi 0, %s96
      %s113 = sphi 0, %s97
      %s121 = sphi 0, %s123
      %s124 = sphi 0, %s121
      %s125 = sphi 0, %s124
      %s141 = sphi 0, %s125
    $region4: #{tpu_custom_call.1} parent=1 // loop_header_branch
      %18 = sbr.rel (%p16) target = $region8
    $region5: #{tpu_custom_call.1} parent=1 // loop_body
      %s20 = ssub.s32 %s15, 1
      %s21 = ssub.s32 %s15, 2
      %s28 = sadd.s32 1, %s23
      %p29 = scmp.ge.s32.totalorder %s28, 2
      %s30 = scalar_select %p29, 0, %s28
      %s31 = sadd.s32 1, %s22
      %s32 = scalar_select %p29, %s31, %s22
      %p33 = scmp.ge.s32.totalorder %s32, 4
      %s34 = scalar_select %p33, 0, %s32
      %s35 = ssub.s32 %s22, %s34
      %s36 = ssub.s32 %s23, %s30
      %s37 = sor.u32 %s35, %s36
      %p38 = scmp.eq.s32.totalorder %s37, 0
      %s40 = sadd.s32 %s39, 1
      %s41 = scalar_select %p38, %s39, %s40
      %p44 = pneg %p38
      %p45 = scmp.eq.s32.totalorder %s15, 7
      %p46 = por %p44, %p45
      %p47 = scmp.ne.s32.totalorder %s39, %s42
      %p48 = scmp.eq.s32.totalorder %s15, 0
      %p49 = por %p47, %p48
      %p50 = scmp.ne.s32.totalorder %s39, %s42
      %p51 = scmp.eq.s32.totalorder %s20, 7
      %p52 = por %p50, %p51
      %p53 = scmp.ne.s32.totalorder %s42, %s43
      %p54 = scmp.eq.s32.totalorder %s20, 0
      %p55 = por %p53, %p54
      %p56 = scmp.ne.s32.totalorder %s42, %s43
      %p57 = scmp.eq.s32.totalorder %s21, 7
      %p58 = por %p56, %p57
      %p60 = scmp.ne.s32.totalorder %s43, %s59
      %p61 = scmp.eq.s32.totalorder %s21, 0
      %p62 = por %p60, %p61
      %s63 = ssub.s32 %s22, %s34
      %s64 = ssub.s32 %s23, %s30
      %s65 = sor.u32 %s63, %s64
      %p66 = scmp.eq.s32.totalorder %s65, 0
      %s68 = sadd.s32 %s67, 1
      %s69 = scalar_select %p66, %s67, %s68
      %p72 = pneg %p66
      %p73 = scmp.eq.s32.totalorder %s15, 7
      %p74 = por %p72, %p73
      %p75 = scmp.ne.s32.totalorder %s67, %s70
      %p76 = scmp.eq.s32.totalorder %s15, 0
      %p77 = por %p75, %p76
      %p78 = scmp.ne.s32.totalorder %s67, %s70
      %p79 = scmp.eq.s32.totalorder %s20, 7
      %p80 = por %p78, %p79
      %p81 = scmp.ne.s32.totalorder %s70, %s71
      %p82 = scmp.eq.s32.totalorder %s20, 0
      %p83 = por %p81, %p82
      %p84 = scmp.ne.s32.totalorder %s70, %s71
      %p85 = scmp.eq.s32.totalorder %s21, 7
      %p86 = por %p84, %p85
      %p88 = scmp.ne.s32.totalorder %s71, %s87
      %p89 = scmp.eq.s32.totalorder %s21, 0
      %p90 = por %p88, %p89
      %s91 = ssub.s32 %s23, %s30
      %p92 = scmp.eq.s32.totalorder %s91, 0
      %s94 = sadd.s32 %s93, 1
      %s95 = scalar_select %p92, %s93, %s94
      %p98 = pneg %p92
      %p99 = scmp.eq.s32.totalorder %s15, 7
      %p100 = por %p98, %p99
      %p101 = scmp.ne.s32.totalorder %s93, %s96
      %p102 = scmp.eq.s32.totalorder %s15, 0
      %p103 = por %p101, %p102
      %p104 = scmp.ne.s32.totalorder %s93, %s96
      %p105 = scmp.eq.s32.totalorder %s20, 7
      %p106 = por %p104, %p105
      %p107 = scmp.ne.s32.totalorder %s96, %s97
      %p108 = scmp.eq.s32.totalorder %s20, 0
      %p109 = por %p107, %p108
      %p110 = scmp.ne.s32.totalorder %s96, %s97
      %p111 = scmp.eq.s32.totalorder %s21, 7
      %p112 = por %p110, %p111
      %p114 = scmp.ne.s32.totalorder %s97, %s113
      %p115 = scmp.eq.s32.totalorder %s21, 0
      %p116 = por %p114, %p115
      %s117 = ssub.s32 %s22, %s34
      %s118 = ssub.s32 %s23, %s30
      %s119 = sor.u32 %s117, %s118
      %p120 = scmp.eq.s32.totalorder %s119, 0
      %s122 = sadd.s32 %s121, 1
      %s123 = scalar_select %p120, %s121, %s122
      %p126 = pneg %p120
      %p127 = scmp.eq.s32.totalorder %s15, 7
      %p128 = por %p126, %p127
      %p129 = scmp.ne.s32.totalorder %s121, %s124
      %p130 = scmp.eq.s32.totalorder %s15, 0
      %p131 = por %p129, %p130
      %p132 = scmp.ne.s32.totalorder %s121, %s124
      %p133 = scmp.eq.s32.totalorder %s20, 7
      %p134 = por %p132, %p133
      %p135 = scmp.ne.s32.totalorder %s124, %s125
      %p136 = scmp.eq.s32.totalorder %s20, 0
      %p137 = por %p135, %p136
      %p138 = scmp.ne.s32.totalorder %s124, %s125
      %p139 = scmp.eq.s32.totalorder %s21, 7
      %p140 = por %p138, %p139
      %p142 = scmp.ne.s32.totalorder %s125, %s141
      %p143 = scmp.eq.s32.totalorder %s21, 0
      %p144 = por %p142, %p143
      %p145 = scmp.le.s32.totalorder 1, %s15
      %p146 = scmp.lt.s32.totalorder %s15, 9
      %p147 = pnand %p145, %p146
      %p148 = pneg %p147
      // Predicated region
      $region9: #{tpu_custom_call.1} parent=5 // pred_check
        _
      $region10: #{tpu_custom_call.1} parent=5 // pred_check_branch
        %150 = sbr.rel (%p147) target = $region12
      $region11: #{tpu_custom_call.1} parent=5 // pred_region
        %s151 = ssub.s32 %s15, 1
      $region12: #{tpu_custom_call.1} parent=5 // pred_fallthru
        _
      %p152 = scmp.lt.s32.totalorder %s15, 8
      // Predicated region
      $region13: #{tpu_custom_call.1} parent=5 // pred_check
        %p153 = pneg %p152
      $region14: #{tpu_custom_call.1} parent=5 // pred_check_branch
        %155 = sbr.rel (%p153) target = $region16
      $region15: #{tpu_custom_call.1} parent=5 // pred_region
        // Predicated region
        $region17: #{tpu_custom_call.1} parent=15 // pred_check
          %p156 = pneg %p49
        $region18: #{tpu_custom_call.1} parent=15 // pred_check_branch
          %158 = sbr.rel (%p156) target = $region20
        $region19: #{tpu_custom_call.1} parent=15 // pred_region
          %s159 = sand.u32 %s39, 1
          %s160 = scalar_lea.sflag [#allocation3], %s159
          %s161 = sand.u32 %s39, 1
          %s162 = smul.addr %s161, 16
          %s163 = scalar_lea.vmem [#allocation2], %s162
          %165 = vsyncadd %s160, 0
          %s166 = smul.addr %s22, 2
          %s167 = sadd.s32 %s23, %s166
          %s168 = smul.addr %s167, 8
          %s169 = scalar_lea.hbm %s0, %s168
          %s170 = sshll.u32 %s169, 4
          %s171 = int_to_ptr.hbm [resolvable:$true] %s170
          %s172 = sshll.u32 %s163, 4
          %s173 = int_to_ptr.vmem [resolvable:$true] %s172
          %178 = dma.hbm_to_vmem [thread:$0]  %s171, 256, %s173, %s160, 1024, 128, 8
        $region20: #{tpu_custom_call.1} parent=15 // pred_fallthru
          _
        // Predicated region
        $region21: #{tpu_custom_call.1} parent=15 // pred_check
          %p179 = pneg %p77
        $region22: #{tpu_custom_call.1} parent=15 // pred_check_branch
          %181 = sbr.rel (%p179) target = $region24
        $region23: #{tpu_custom_call.1} parent=15 // pred_region
          %s182 = sand.u32 %s67, 1
          %s183 = scalar_lea.sflag [#allocation5], %s182
          %s184 = sand.u32 %s67, 1
          %s185 = smul.addr %s184, 16
          %s186 = scalar_lea.vmem [#allocation4], %s185
          %188 = vsyncadd %s183, 0
          %s189 = smul.addr %s22, 2
          %s190 = sadd.s32 %s23, %s189
          %s191 = smul.addr %s190, 8
          %s192 = scalar_lea.hbm %s1, %s191
          %s193 = sshll.u32 %s192, 4
          %s194 = int_to_ptr.hbm [resolvable:$true] %s193
          %s195 = sshll.u32 %s186, 4
          %s196 = int_to_ptr.vmem [resolvable:$true] %s195
          %201 = dma.hbm_to_vmem [thread:$0]  %s194, 256, %s196, %s183, 1024, 128, 8
        $region24: #{tpu_custom_call.1} parent=15 // pred_fallthru
          _
        // Predicated region
        $region25: #{tpu_custom_call.1} parent=15 // pred_check
          %p202 = pneg %p103
        $region26: #{tpu_custom_call.1} parent=15 // pred_check_branch
          %204 = sbr.rel (%p202) target = $region28
        $region27: #{tpu_custom_call.1} parent=15 // pred_region
          %p205 = scmp.lt.s32.totalorder %s23, 1
          %s206 = scalar_select %p205, %s23, 1
          %s207 = smul.addr %s206, 8
          %s208 = scalar_lea.vmem %s2, %s207
        $region28: #{tpu_custom_call.1} parent=15 // pred_fallthru
          _
      $region16: #{tpu_custom_call.1} parent=5 // pred_fallthru
        _
      %p209 = scmp.le.s32.totalorder 1, %s15
      %p210 = scmp.lt.s32.totalorder %s15, 9
      %p211 = pnand %p209, %p210
      %p212 = pneg %p211
      // Predicated region
      $region29: #{tpu_custom_call.1} parent=5 // pred_check
        _
      $region30: #{tpu_custom_call.1} parent=5 // pred_check_branch
        %214 = sbr.rel (%p211) target = $region32
      $region31: #{tpu_custom_call.1} parent=5 // pred_region
        %s215 = ssub.s32 %s15, 1
        %s216 = sand.u32 %s42, 1
        %s217 = scalar_lea.sflag [#allocation3], %s216
        %s218 = sand.u32 %s42, 1
        %s219 = smul.addr %s218, 16
        %s220 = scalar_lea.vmem [#allocation2], %s219
        // Predicated region
        $region33: #{tpu_custom_call.1} parent=31 // pred_check
          %p221 = pneg %p55
        $region34: #{tpu_custom_call.1} parent=31 // pred_check_branch
          %223 = sbr.rel (%p221) target = $region36
        $region35: #{tpu_custom_call.1} parent=31 // pred_region
          %225 = dma.done %s217, 256
        $region36: #{tpu_custom_call.1} parent=31 // pred_fallthru
          _
        %s226 = sand.u32 %s70, 1
        %s227 = scalar_lea.sflag [#allocation5], %s226
        %s228 = sand.u32 %s70, 1
        %s229 = smul.addr %s228, 16
        %s230 = scalar_lea.vmem [#allocation4], %s229
        // Predicated region
        $region37: #{tpu_custom_call.1} parent=31 // pred_check
          %p231 = pneg %p83
        $region38: #{tpu_custom_call.1} parent=31 // pred_check_branch
          %233 = sbr.rel (%p231) target = $region40
        $region39: #{tpu_custom_call.1} parent=31 // pred_region
          %235 = dma.done %s227, 256
        $region40: #{tpu_custom_call.1} parent=31 // pred_fallthru
          _
        %s236 = sand.u32 %s42, 1
        %s237 = scalar_lea.sflag [#allocation3], %s236
        %s238 = sand.u32 %s42, 1
        %s239 = smul.addr %s238, 16
        %s240 = scalar_lea.vmem [#allocation2], %s239
        %p241 = pneg %p55
        %p242 = pneg %p52
        %s243 = sand.u32 %s70, 1
        %s244 = scalar_lea.sflag [#allocation5], %s243
        %s245 = sand.u32 %s70, 1
        %s246 = smul.addr %s245, 16
        %s247 = scalar_lea.vmem [#allocation4], %s246
        %p248 = pneg %p83
        %p249 = pneg %p80
        %p250 = scmp.lt.s32.totalorder %s25, 1
        %s251 = scalar_select %p250, %s25, 1
        %s252 = smul.addr %s251, 8
        %s253 = scalar_lea.vmem %s2, %s252
        %p254 = pneg %p109
        %p255 = pneg %p106
        %p256 = pneg %p137
        %p257 = pneg %p134
        %p258 = scmp.lt.s32.totalorder %s24, 3
        %s259 = scalar_select %p258, %s24, 3
        %p260 = scmp.lt.s32.totalorder %s25, 1
        %s261 = scalar_select %p260, %s25, 1
        %s262 = smul.addr %s259, 2
        %s263 = sadd.s32 %s261, %s262
        %s264 = scalar_lea.vmem %s3, %s263
        %p265 = scmp.lt.s32.totalorder %s25, 1
        %s266 = scalar_select %p265, %s25, 1
        %s267 = smul.addr %s266, 8
        %s268 = scalar_lea.vmem %s2, %s267
        %p269 = scmp.lt.s32.totalorder %s24, 3
        %s270 = scalar_select %p269, %s24, 3
        %p271 = scmp.lt.s32.totalorder %s25, 1
        %s272 = scalar_select %p271, %s25, 1
        %s273 = smul.addr %s270, 2
        %s274 = sadd.s32 %s272, %s273
        %s275 = scalar_lea.vmem %s3, %s274
        %v276 = vld [vmem:[%s220] sm:$0xff]
        %v277 = vld [vmem:[%s220 + $0x8] sm:$0xff]
        %v278 = vld [vmem:[%s230] sm:$0xff]
        %v279 = vld [vmem:[%s230 + $0x8] sm:$0xff]
        %v280 = vld [vmem:[%s268] sm:$0xff]
        %v281 = vsub.f32 %v276, %v278
        %v282 = vsub.f32 %v277, %v279
        %v283 = vand.u32 2147483647, %v281
        %v284 = vand.u32 2147483647, %v282
        %286 = vset.pattern.permute.xlu0 0
        %287 = vperm.xlu0 %286, %v280
        %v288 = vpop.permute.xlu0 %287
        %v290 = vmul.f32 %v283, %v288
        %v291 = vmul.f32 %v284, %v288
        %vm292 = vcmask 130048
        %v293 = vsel %vm292, %v290, 0.0
        %v294 = vsel %vm292, %v291, 0.0
        %v295 = vadd.f32 %v293, %v294
        %296 = vadd.xlane.f32.xlu0 %v295
        %v297 = vpop.xlane.xlu0 %296
        %v298 = vrot.slane %v297, 4
        %v299 = vadd.f32 %v297, %v298
        %v300 = vrot.slane %v299, 2
        %v301 = vadd.f32 %v299, %v300
        %v302 = vrot.slane %v301, 1
        %v303 = vadd.f32 %v301, %v302
        %s304 = vtos %v303
        %v305 = vstv %s304
        %v306 = vadd.f32 %v305, 0.0
        %vm307 = vcmask 0
        %308 = vst.msk [vmem:[%s275] sm:$0x1] %vm307, %v306
        %p309 = scmp.lt.s32.totalorder %s24, 3
        %s310 = scalar_select %p309, %s24, 3
        %p311 = scmp.lt.s32.totalorder %s25, 1
        %s312 = scalar_select %p311, %s25, 1
        %s313 = smul.addr %s310, 2
        %s314 = sadd.s32 %s312, %s313
        %s315 = scalar_lea.vmem %s3, %s314
        // Predicated region
        $region41: #{tpu_custom_call.1} parent=31 // pred_check
          %p316 = pneg %p134
        $region42: #{tpu_custom_call.1} parent=31 // pred_check_branch
          %318 = sbr.rel (%p316) target = $region44
        $region43: #{tpu_custom_call.1} parent=31 // pred_region
          _
        $region44: #{tpu_custom_call.1} parent=31 // pred_fallthru
          _
      $region32: #{tpu_custom_call.1} parent=5 // pred_fallthru
        _
      %p319 = scmp.le.s32.totalorder 2, %s15
      // Predicated region
      $region45: #{tpu_custom_call.1} parent=5 // pred_check
        %p320 = pneg %p319
      $region46: #{tpu_custom_call.1} parent=5 // pred_check_branch
        %322 = sbr.rel (%p320) target = $region48
      $region47: #{tpu_custom_call.1} parent=5 // pred_region
        %s323 = ssub.s32 %s15, 2
        // Predicated region
        $region49: #{tpu_custom_call.1} parent=47 // pred_check
          %p324 = pneg %p140
        $region50: #{tpu_custom_call.1} parent=47 // pred_check_branch
          %326 = sbr.rel (%p324) target = $region52
        $region51: #{tpu_custom_call.1} parent=47 // pred_region
          %p327 = scmp.lt.s32.totalorder %s26, 3
          %s328 = scalar_select %p327, %s26, 3
          %p329 = scmp.lt.s32.totalorder %s27, 1
          %s330 = scalar_select %p329, %s27, 1
          %s331 = smul.addr %s328, 2
          %s332 = sadd.s32 %s330, %s331
          %s333 = scalar_lea.vmem %s3, %s332
        $region52: #{tpu_custom_call.1} parent=47 // pred_fallthru
          _
      $region48: #{tpu_custom_call.1} parent=5 // pred_fallthru
        _
    $region6: #{tpu_custom_call.1} parent=1 // loop_footer
      %s19 = sadd.s32 1, %s15
    $region7: #{tpu_custom_call.1} parent=1 // loop_footer_branch
      %14 = sbr.rel target = $region3
    $region8: #{tpu_custom_call.1} parent=1 // loop_exit
      _
    %334 = vsyncpa [#allocation3], 1
    %s335 = scalar_lea.sflag [#allocation3], 1
    %336 = vsyncpa %s335, 1
    %337 = vsyncpa [#allocation5], 1
    %s338 = scalar_lea.sflag [#allocation5], 1
    %339 = vsyncpa %s338, 1

</llo_original>
